<compile_context>
chip_gen: v7x
topology: tpu7x:2x2x1
jax: 0.10.0
libtpu: 0.0.40
codegen_flags: <defaults>
</compile_context>

<pallas_src>
import functools

import jax
import jax.numpy as jnp
from jax.experimental import pallas as pl
from jax.experimental.pallas import tpu as pltpu


H_PAD = 128          # padded hidden width  (lane-dense MXU N/K dim)
O_PAD = 128          # padded output width  (lane-dense store path)
O_REAL = 10          # true output width of linear2
TM_MAX = 2048        # max rows per grid step (x:128KiB bf16, out:1MiB f32)


def _round_up(a, b):
    return (a + b - 1) // b * b


def _sigmoid_eup(y):
    # sigmoid(y) == 0.5 * (tanh(y/2) + 1); tanh runs on the EUP slot.
    return 0.5 * (jnp.tanh(0.5 * y) + 1.0)


def _net_kernel(x_ref, w1_ref, b1_ref, w2_ref, b2_ref, o_ref):
    # x_ref:  (TM, D)      bf16     w1_ref: (D, H_PAD)      bf16
    # b1_ref: (1, H_PAD)   f32      w2_ref: (H_PAD, O_PAD)  bf16
    # b2_ref: (1, O_PAD)   f32      o_ref:  (TM, O_PAD)     f32
    h = jnp.dot(x_ref[...], w1_ref[...], preferred_element_type=jnp.float32)
    h = _sigmoid_eup(h + b1_ref[...])                       # f32 epilogue
    y = jnp.dot(h.astype(jnp.bfloat16), w2_ref[...],
                preferred_element_type=jnp.float32)
    o_ref[...] = _sigmoid_eup(y + b2_ref[...]).astype(o_ref.dtype)


def prepare_params(w1, b1, w2, b2):
    """One-time parameter packing (hoisted off the forward hot path).

    w1: (H, D), b1: (H,), w2: (O_REAL, H), b2: (O_REAL,)  — PyTorch layout.
    Returns bf16 (D, H_PAD), f32 (1, H_PAD), bf16 (H_PAD, O_PAD), f32 (1, O_PAD).
    """
    H, D = w1.shape
    w1_t = jnp.zeros((D, H_PAD), jnp.float32).at[:, :H].set(w1.T)
    b1_p = jnp.zeros((1, H_PAD), jnp.float32).at[0, :H].set(b1)
    # Padded hidden units have zero incoming w2 rows -> no effect on output.
    w2_t = jnp.zeros((H_PAD, O_PAD), jnp.float32).at[:H, :O_REAL].set(w2.T)
    b2_p = jnp.zeros((1, O_PAD), jnp.float32).at[0, :O_REAL].set(b2)
    return (w1_t.astype(jnp.bfloat16), b1_p,
            w2_t.astype(jnp.bfloat16), b2_p)


@jax.jit
def net_forward(x, w1_t, b1_p, w2_t, b2_p):
    """x: (B, S, D) float32, params from prepare_params -> (B, S, 10) f32."""
    B, S, D = x.shape
    M = B * S

    # Row tiling: TM rows per grid step, padded so the grid divides exactly.
    if M <= TM_MAX:
        TM = _round_up(M, 8)
        M_pad = TM
    else:
        TM = TM_MAX
        M_pad = _round_up(M, TM)
    grid = (M_pad // TM,)

    x2 = x.reshape(M, D).astype(jnp.bfloat16)        # bf16 activation stream
    if M_pad != M:
        x2 = jnp.pad(x2, ((0, M_pad - M), (0, 0)))

    out = pl.pallas_call(
        _net_kernel,
        out_shape=jax.ShapeDtypeStruct((M_pad, O_PAD), jnp.float32),
        grid=grid,
        in_specs=[
            pl.BlockSpec((TM, D), lambda i: (i, 0)),          # x tile
            pl.BlockSpec((D, H_PAD), lambda i: (0, 0)),       # w1 (resident)
            pl.BlockSpec((1, H_PAD), lambda i: (0, 0)),       # b1 (resident)
            pl.BlockSpec((H_PAD, O_PAD), lambda i: (0, 0)),   # w2 (resident)
            pl.BlockSpec((1, O_PAD), lambda i: (0, 0)),       # b2 (resident)
        ],
        out_specs=pl.BlockSpec((TM, O_PAD), lambda i: (i, 0)),
        compiler_params=pltpu.CompilerParams(
            # Row grid is embarrassingly parallel -> shards across v7x's 2 TCs.
            dimension_semantics=("parallel",),
            # Plenty of headroom for double-buffered 2048-row tiles.
            vmem_limit_bytes=32 * 1024 * 1024,
        ),
    )(x2, w1_t, b1_p, w2_t, b2_p)

    return out[:M, :O_REAL].reshape(B, S, O_REAL)


def init_params(key, input_size, hidden_size):
    """Deterministic params, mimicking nn.Linear's U(-1/sqrt(fan_in), +) init."""
    k1, k2, k3, k4 = jax.random.split(key, 4)
    bound1 = 1.0 / jnp.sqrt(input_size)
    bound2 = 1.0 / jnp.sqrt(hidden_size)
    w1 = jax.random.uniform(k1, (hidden_size, input_size), jnp.float32,
                            -bound1, bound1)
    b1 = jax.random.uniform(k2, (hidden_size,), jnp.float32, -bound1, bound1)
    w2 = jax.random.uniform(k3, (O_REAL, hidden_size), jnp.float32,
                            -bound2, bound2)
    b2 = jax.random.uniform(k4, (O_REAL,), jnp.float32, -bound2, bound2)
    return w1, b1, w2, b2


if __name__ == "__main__":
    key = jax.random.PRNGKey(0)
    kx, kp = jax.random.split(key)

    B, S, INPUT_SIZE, HIDDEN = 2, 8, 32, 32
    x = jax.random.normal(kx, (B, S, INPUT_SIZE), jnp.float32)
    w1, b1, w2, b2 = init_params(kp, INPUT_SIZE, HIDDEN)

    # One-time parameter packing (kept off the per-call hot path).
    params = prepare_params(w1, b1, w2, b2)

    y = net_forward(x, *params)
    y = jax.block_until_ready(y)
    assert y.shape == (B, S, O_REAL), y.shape

    # Reference 1: exact mirror of the kernel's numerics (bf16 operands,
    # f32 accumulate / epilogue) — tight tolerance.
    xb = x.astype(jnp.bfloat16)
    h_ref = jax.nn.sigmoid(
        jnp.dot(xb, w1.T.astype(jnp.bfloat16),
                preferred_element_type=jnp.float32) + b1)
    mirror = jax.nn.sigmoid(
        jnp.dot(h_ref.astype(jnp.bfloat16), w2.T.astype(jnp.bfloat16),
                preferred_element_type=jnp.float32) + b2)
    assert jnp.allclose(y, mirror, atol=2e-3, rtol=2e-3), "mismatch vs bf16 mirror"

    # Reference 2: full-f32 PyTorch-equivalent math — loose tolerance for the
    # bf16 matmul operands.
    ref_f32 = jax.nn.sigmoid(jax.nn.sigmoid(x @ w1.T + b1) @ w2.T + b2)
    assert jnp.allclose(y, ref_f32, atol=5e-2), "mismatch vs f32 reference"

    print("KERNEL_OK")
</pallas_src>

<mosaic_0001>
module attributes {stable_mosaic.version = 11 : i64} {
  func.func @_net_kernel(%arg0: i32, %arg1: memref<16x32xbf16, #tpu.memory_space<vmem>>, %arg2: memref<32x128xbf16, #tpu.memory_space<vmem>>, %arg3: memref<1x128xf32, #tpu.memory_space<vmem>>, %arg4: memref<128x128xbf16, #tpu.memory_space<vmem>>, %arg5: memref<1x128xf32, #tpu.memory_space<vmem>>, %arg6: memref<16x128xf32, #tpu.memory_space<vmem>>) attributes {dimension_semantics = [#tpu.dimension_semantics<parallel>], iteration_bounds = array<i64: 1>, scalar_prefetch = 0 : i64, scratch_operands = 0 : i64, tpu.core_type = #tpu.core_type<tc>, window_params = [{transform_indices = @transform_0, window_bounds = array<i64: 16, 32>}, {pipeline_mode = #tpu.pipeline_mode<synchronous>, transform_indices = @transform_1, window_bounds = array<i64: 32, 128>}, {pipeline_mode = #tpu.pipeline_mode<synchronous>, transform_indices = @transform_2, window_bounds = array<i64: 1, 128>}, {pipeline_mode = #tpu.pipeline_mode<synchronous>, transform_indices = @transform_3, window_bounds = array<i64: 128, 128>}, {pipeline_mode = #tpu.pipeline_mode<synchronous>, transform_indices = @transform_4, window_bounds = array<i64: 1, 128>}, {transform_indices = @transform_5, window_bounds = array<i64: 16, 128>}]} {
    %c0 = arith.constant 0 : index
    %c0_0 = arith.constant 0 : index
    %0 = vector.load %arg1[%c0, %c0_0] : memref<16x32xbf16, #tpu.memory_space<vmem>>, vector<16x32xbf16>
    %c0_1 = arith.constant 0 : index
    %c0_2 = arith.constant 0 : index
    %1 = vector.load %arg2[%c0_1, %c0_2] : memref<32x128xbf16, #tpu.memory_space<vmem>>, vector<32x128xbf16>
    %cst = arith.constant dense<0.000000e+00> : vector<16x128xf32>
    %2 = tpu.matmul %0, %1, %cst {dimension_numbers = #tpu.dot_dimension_numbers<[1], [0], [0], [1], [0, 0, 1, 1], [], []>} : vector<16x32xbf16>, vector<32x128xbf16>, vector<16x128xf32> -> vector<16x128xf32>
    %c0_3 = arith.constant 0 : index
    %c0_4 = arith.constant 0 : index
    %3 = vector.load %arg3[%c0_3, %c0_4] : memref<1x128xf32, #tpu.memory_space<vmem>>, vector<1x128xf32>
    %4 = vector.broadcast %3 : vector<1x128xf32> to vector<16x128xf32>
    %5 = arith.addf %2, %4 : vector<16x128xf32>
    %cst_5 = arith.constant 5.000000e-01 : f32
    %6 = vector.broadcast %cst_5 : f32 to vector<16x128xf32>
    %7 = arith.mulf %6, %5 : vector<16x128xf32>
    %8 = math.tanh %7 : vector<16x128xf32>
    %cst_6 = arith.constant 1.000000e+00 : f32
    %9 = vector.broadcast %cst_6 : f32 to vector<16x128xf32>
    %10 = arith.addf %8, %9 : vector<16x128xf32>
    %cst_7 = arith.constant 5.000000e-01 : f32
    %11 = vector.broadcast %cst_7 : f32 to vector<16x128xf32>
    %12 = arith.mulf %11, %10 : vector<16x128xf32>
    %13 = arith.truncf %12 : vector<16x128xf32> to vector<16x128xbf16>
    %c0_8 = arith.constant 0 : index
    %c0_9 = arith.constant 0 : index
    %14 = vector.load %arg4[%c0_8, %c0_9] : memref<128x128xbf16, #tpu.memory_space<vmem>>, vector<128x128xbf16>
    %cst_10 = arith.constant dense<0.000000e+00> : vector<16x128xf32>
    %15 = tpu.matmul %13, %14, %cst_10 {dimension_numbers = #tpu.dot_dimension_numbers<[1], [0], [0], [1], [0, 0, 1, 1], [], []>} : vector<16x128xbf16>, vector<128x128xbf16>, vector<16x128xf32> -> vector<16x128xf32>
    %c0_11 = arith.constant 0 : index
    %c0_12 = arith.constant 0 : index
    %16 = vector.load %arg5[%c0_11, %c0_12] : memref<1x128xf32, #tpu.memory_space<vmem>>, vector<1x128xf32>
    %17 = vector.broadcast %16 : vector<1x128xf32> to vector<16x128xf32>
    %18 = arith.addf %15, %17 : vector<16x128xf32>
    %cst_13 = arith.constant 5.000000e-01 : f32
    %19 = vector.broadcast %cst_13 : f32 to vector<16x128xf32>
    %20 = arith.mulf %19, %18 : vector<16x128xf32>
    %21 = math.tanh %20 : vector<16x128xf32>
    %cst_14 = arith.constant 1.000000e+00 : f32
    %22 = vector.broadcast %cst_14 : f32 to vector<16x128xf32>
    %23 = arith.addf %21, %22 : vector<16x128xf32>
    %cst_15 = arith.constant 5.000000e-01 : f32
    %24 = vector.broadcast %cst_15 : f32 to vector<16x128xf32>
    %25 = arith.mulf %24, %23 : vector<16x128xf32>
    %c0_16 = arith.constant 0 : index
    %c0_17 = arith.constant 0 : index
    %26 = vector.load %arg6[%c0_16, %c0_17] : memref<16x128xf32, #tpu.memory_space<vmem>>, vector<16x128xf32>
    tpu.vector_store %arg6[%c0_16, %c0_17], %25 {strides = array<i32>} : memref<16x128xf32, #tpu.memory_space<vmem>>, vector<16x128xf32>,
    return
  }
  func.func @transform_0(%arg0: i32) -> (i32, i32) {
    %c0_i32 = arith.constant 0 : i32
    %c0_i32_0 = arith.constant 0 : i32
    return %arg0, %c0_i32 : i32, i32
  }
  func.func @transform_1(%arg0: i32) -> (i32, i32) {
    %c0_i32 = arith.constant 0 : i32
    %c0_i32_0 = arith.constant 0 : i32
    %c0_i32_1 = arith.constant 0 : i32
    return %c0_i32, %c0_i32_0 : i32, i32
  }
  func.func @transform_2(%arg0: i32) -> (i32, i32) {
    %c0_i32 = arith.constant 0 : i32
    %c0_i32_0 = arith.constant 0 : i32
    %c0_i32_1 = arith.constant 0 : i32
    return %c0_i32, %c0_i32_0 : i32, i32
  }
  func.func @transform_3(%arg0: i32) -> (i32, i32) {
    %c0_i32 = arith.constant 0 : i32
    %c0_i32_0 = arith.constant 0 : i32
    %c0_i32_1 = arith.constant 0 : i32
    return %c0_i32, %c0_i32_0 : i32, i32
  }
  func.func @transform_4(%arg0: i32) -> (i32, i32) {
    %c0_i32 = arith.constant 0 : i32
    %c0_i32_0 = arith.constant 0 : i32
    %c0_i32_1 = arith.constant 0 : i32
    return %c0_i32, %c0_i32_0 : i32, i32
  }
  func.func @transform_5(%arg0: i32) -> (i32, i32) {
    %c0_i32 = arith.constant 0 : i32
    %c0_i32_0 = arith.constant 0 : i32
    return %arg0, %c0_i32 : i32, i32
  }
}

</mosaic_0001>

<llo_original>
// kernel: net_forward.1
$region0: #{net_forward.1}
  #allocation0 [shape = 'u32[]', space=smem, size = 0x4, offset = 0x4, fixed_abs, tag = 'smem constant byte address 0x4 - core index']
  #allocation1 [shape = 'u32[144,128]{1,0:T(1,128)}', space=vmem, size = 0x12000, scoped, tag = 'internal scratch']
  %s0 = inlined_call_operand.vmem [shape: bf16[16,32], index: 0, kind: input, shape index: {}]
  %s1 = inlined_call_operand.vmem [shape: bf16[32,128], index: 1, kind: input, shape index: {}]
  %s2 = inlined_call_operand.vmem [shape: f32[1,128], index: 2, kind: input, shape index: {}]
  %s3 = inlined_call_operand.hbm [shape: bf16[128,128], index: 3, kind: input, shape index: {}]
  %s4 = inlined_call_operand.vmem [shape: f32[1,128], index: 4, kind: input, shape index: {}]
  %s5 = inlined_call_operand.vmem [shape: f32[16,128], index: 5, kind: output, shape index: {}]
  %s6 = sld [smem:[#allocation0]]
  $region34: #{net_forward.1} parent=0
    _
  %s8 = ssub.s32 1, %s6
  %s9 = scalar_select 0, %s8, %s6
  $region1: #{net_forward.1} parent=0
    #allocation2 [shape = 'u8[32768]{0}', space=vmem, size = 0x8000, scoped, tag = 'input window, operand 3, single buffered']
    #allocation3 [shape = 's32[1]{0}', space=sflag, size = 0x4, scoped, tag = 'scoped memory for net_forward.1']
    %10 = vsyncpa [#allocation3], 0
    // Predicated region
    $region2: #{net_forward.1} parent=1 // pred_check
      _
    $region3: #{net_forward.1} parent=1 // pred_check_branch
      %12 = sbr.rel (0) target = $region5
    $region4: #{net_forward.1} parent=1 // pred_region
      _
    $region5: #{net_forward.1} parent=1 // pred_fallthru
      _
    // Predicated region
    $region6: #{net_forward.1} parent=1 // pred_check
      _
    $region7: #{net_forward.1} parent=1 // pred_check_branch
      %14 = sbr.rel (0) target = $region9
    $region8: #{net_forward.1} parent=1 // pred_region
      _
    $region9: #{net_forward.1} parent=1 // pred_fallthru
      _
    // Predicated region
    $region10: #{net_forward.1} parent=1 // pred_check
      _
    $region11: #{net_forward.1} parent=1 // pred_check_branch
      %16 = sbr.rel (0) target = $region13
    $region12: #{net_forward.1} parent=1 // pred_region
      _
    $region13: #{net_forward.1} parent=1 // pred_fallthru
      _
    // Predicated region
    $region14: #{net_forward.1} parent=1 // pred_check
      _
    $region15: #{net_forward.1} parent=1 // pred_check_branch
      %18 = sbr.rel (0) target = $region17
    $region16: #{net_forward.1} parent=1 // pred_region
      %s20 = ssub.s32 1024, 1024
      %21 = vsyncadd [#allocation3], %s20
      %s22 = sshll.u32 [#allocation2], 4
      %s23 = int_to_ptr.vmem [resolvable:$true] %s22
      %28 = dma.hbm_to_vmem [thread:$0]  %s3, 1024, %s23, [#allocation3], 64, 64, 4
    $region17: #{net_forward.1} parent=1 // pred_fallthru
      _
    // Predicated region
    $region18: #{net_forward.1} parent=1 // pred_check
      _
    $region19: #{net_forward.1} parent=1 // pred_check_branch
      %30 = sbr.rel (0) target = $region21
    $region20: #{net_forward.1} parent=1 // pred_region
      _
    $region21: #{net_forward.1} parent=1 // pred_fallthru
      _
    // Predicated region
    $region22: #{net_forward.1} parent=1 // pred_check
      _
    $region23: #{net_forward.1} parent=1 // pred_check_branch
      %32 = sbr.rel (0) target = $region25
    $region24: #{net_forward.1} parent=1 // pred_region
      %33 = dma.done [#allocation3], 1024
    $region25: #{net_forward.1} parent=1 // pred_fallthru
      _
    %v35 = vld [vmem:[%s0] sm:$0xf]
    %v36 = vld [vmem:[%s0 + $0x4] sm:$0xf]
    %v37 = vld [vmem:[%s1] sm:$0xf]
    %v38 = vld [vmem:[%s1 + $0x4] sm:$0xf]
    %v39 = vld [vmem:[%s1 + $0x8] sm:$0xf]
    %v40 = vld [vmem:[%s1 + $0xc] sm:$0xf]
    %v41 = vld [vmem:[%s2] sm:$0x1]
    %v43 = vlaneseq
    %v44 = vshrl.u32 %v43, 7
    %v45 = vsub.s32 0, %v44
    %v46 = vrot.slane %v41, %v45
    %v50 = vunpack.c.l.b16 %v35
    %v51 = vunpack.c.l.b16 %v36
    %v52 = vpack.c.b16 %v51, %v50
    %v57 = vunpack.c.l.b16 %v37
    %v58 = vunpack.c.l.b16 %v38
    %v59 = vunpack.c.l.b16 %v39
    %v60 = vunpack.c.l.b16 %v40
    %v61 = vpack.c.b16 %v58, %v57
    %v62 = vpack.c.b16 %v60, %v59
    %vm65 = vcmask 261120
    %v67 = vsel %vm65, %v52, 0
    %69 = vmatprep.subr.bf16.mxu0 0
    %70 = vmatpush1.bf16.msra.mxu0 %v61
    %71 = vmatprep.subr.bf16.mxu0 0
    %72 = vmatpush1.bf16.msra.mxu0 %v62
    %73 = vmatprep.subr.bf16.mxu0 0
    %74 = vmatpush1.bf16.msra.mxu0 0
    %75 = vmatprep.subr.bf16.mxu0 0
    %76 = vmatpush1.bf16.msra.mxu0 0
    %77 = vmatprep.subr.bf16.mxu0 0
    %78 = vmatpush1.bf16.msra.mxu0 0
    %79 = vmatprep.subr.bf16.mxu0 0
    %80 = vmatpush1.bf16.msra.mxu0 0
    %81 = vmatprep.subr.bf16.mxu0 0
    %82 = vmatpush1.bf16.msra.mxu0 0
    %83 = vmatprep.subr.bf16.mxu0 0
    %84 = vmatpush1.bf16.msra.mxu0 0
    %85 = vmatprep.subr.bf16.mxu0 0
    %86 = vmatpush1.bf16.msra.mxu0 0
    %87 = vmatprep.subr.bf16.mxu0 0
    %88 = vmatpush1.bf16.msra.mxu0 0
    %89 = vmatprep.subr.bf16.mxu0 0
    %90 = vmatpush1.bf16.msra.mxu0 0
    %91 = vmatprep.subr.bf16.mxu0 0
    %92 = vmatpush1.bf16.msra.mxu0 0
    %93 = vmatprep.subr.bf16.mxu0 0
    %94 = vmatpush1.bf16.msra.mxu0 0
    %95 = vmatprep.subr.bf16.mxu0 0
    %96 = vmatpush1.bf16.msra.mxu0 0
    %97 = vmatprep.subr.bf16.mxu0 0
    %98 = vmatpush1.bf16.msra.mxu0 0
    %99 = vmatprep.subr.bf16.mxu0 0
    %100 = vmatpush1.bf16.msra.mxu0 0
    %101 = vmatprep.mubr.bf16.mxu0 0
    %102 = vmatmul.mubr.bf16.gmra.mrb[0].mxu0 %v67
    %v103 = vpop.f32.mrb[0].mxu0
    %v104 = vadd.f32 %v46, %v103
    %v105 = vpop.f32.mrb[0].mxu0
    %v106 = vpop.f32.mrb[0].mxu0
    %v107 = vadd.f32 %v46, %v106
    %v108 = vpop.f32.mrb[0].mxu0
    %109 = vdwg.mxu0
    %v110 = vmul.f32 %v104, 0.5
    %v111 = vmul.f32 %v107, 0.5
    %v112 = vtanh.pop %v110
    %v113 = vtanh.pop %v111
    %v114 = vadd.f32 %v112, 1.0
    %v115 = vadd.f32 %v113, 1.0
    %v116 = vmul.f32 %v114, 0.5
    %v117 = vmul.f32 %v115, 0.5
    %v118 = vpack.c.bf16 %v117, %v116
    %v119 = vld [vmem:[#allocation2] sm:$0xf]
    %v120 = vld [vmem:[#allocation2 + $0x4] sm:$0xf]
    %v121 = vld [vmem:[#allocation2 + $0x8] sm:$0xf]
    %v122 = vld [vmem:[#allocation2 + $0xc] sm:$0xf]
    %v123 = vld [vmem:[#allocation2 + $0x10] sm:$0xf]
    %v124 = vld [vmem:[#allocation2 + $0x14] sm:$0xf]
    %v125 = vld [vmem:[#allocation2 + $0x18] sm:$0xf]
    %v126 = vld [vmem:[#allocation2 + $0x1c] sm:$0xf]
    %v127 = vld [vmem:[#allocation2 + $0x20] sm:$0xf]
    %v128 = vld [vmem:[#allocation2 + $0x24] sm:$0xf]
    %v129 = vld [vmem:[#allocation2 + $0x28] sm:$0xf]
    %v130 = vld [vmem:[#allocation2 + $0x2c] sm:$0xf]
    %v131 = vld [vmem:[#allocation2 + $0x30] sm:$0xf]
    %v132 = vld [vmem:[#allocation2 + $0x34] sm:$0xf]
    %v133 = vld [vmem:[#allocation2 + $0x38] sm:$0xf]
    %v134 = vld [vmem:[#allocation2 + $0x3c] sm:$0xf]
    %v135 = vld [vmem:[%s4] sm:$0x1]
    %v137 = vlaneseq
    %v138 = vshrl.u32 %v137, 7
    %v139 = vsub.s32 0, %v138
    %v140 = vrot.slane %v135, %v139
    %v158 = vunpack.c.l.b16 %v119
    %v159 = vunpack.c.l.b16 %v120
    %v160 = vunpack.c.l.b16 %v121
    %v161 = vunpack.c.l.b16 %v122
    %v162 = vunpack.c.l.b16 %v123
    %v163 = vunpack.c.l.b16 %v124
    %v164 = vunpack.c.l.b16 %v125
    %v165 = vunpack.c.l.b16 %v126
    %v166 = vunpack.c.l.b16 %v127
    %v167 = vunpack.c.l.b16 %v128
    %v168 = vunpack.c.l.b16 %v129
    %v169 = vunpack.c.l.b16 %v130
    %v170 = vunpack.c.l.b16 %v131
    %v171 = vunpack.c.l.b16 %v132
    %v172 = vunpack.c.l.b16 %v133
    %v173 = vunpack.c.l.b16 %v134
    %v174 = vpack.c.b16 %v159, %v158
    %v175 = vpack.c.b16 %v161, %v160
    %v176 = vpack.c.b16 %v163, %v162
    %v177 = vpack.c.b16 %v165, %v164
    %v178 = vpack.c.b16 %v167, %v166
    %v179 = vpack.c.b16 %v169, %v168
    %v180 = vpack.c.b16 %v171, %v170
    %v181 = vpack.c.b16 %v173, %v172
    %190 = vmatprep.subr.bf16.mxu0 0
    %191 = vmatpush1.bf16.msra.mxu0 %v174
    %192 = vmatprep.subr.bf16.mxu0 0
    %193 = vmatpush1.bf16.msra.mxu0 %v175
    %194 = vmatprep.subr.bf16.mxu0 0
    %195 = vmatpush1.bf16.msra.mxu0 %v176
    %196 = vmatprep.subr.bf16.mxu0 0
    %197 = vmatpush1.bf16.msra.mxu0 %v177
    %198 = vmatprep.subr.bf16.mxu0 0
    %199 = vmatpush1.bf16.msra.mxu0 %v178
    %200 = vmatprep.subr.bf16.mxu0 0
    %201 = vmatpush1.bf16.msra.mxu0 %v179
    %202 = vmatprep.subr.bf16.mxu0 0
    %203 = vmatpush1.bf16.msra.mxu0 %v180
    %204 = vmatprep.subr.bf16.mxu0 0
    %205 = vmatpush1.bf16.msra.mxu0 %v181
    %206 = vmatprep.subr.bf16.mxu0 0
    %207 = vmatpush1.bf16.msra.mxu0 0
    %208 = vmatprep.subr.bf16.mxu0 0
    %209 = vmatpush1.bf16.msra.mxu0 0
    %210 = vmatprep.subr.bf16.mxu0 0
    %211 = vmatpush1.bf16.msra.mxu0 0
    %212 = vmatprep.subr.bf16.mxu0 0
    %213 = vmatpush1.bf16.msra.mxu0 0
    %214 = vmatprep.subr.bf16.mxu0 0
    %215 = vmatpush1.bf16.msra.mxu0 0
    %216 = vmatprep.subr.bf16.mxu0 0
    %217 = vmatpush1.bf16.msra.mxu0 0
    %218 = vmatprep.subr.bf16.mxu0 0
    %219 = vmatpush1.bf16.msra.mxu0 0
    %220 = vmatprep.subr.bf16.mxu0 0
    %221 = vmatpush1.bf16.msra.mxu0 0
    %222 = vmatprep.mubr.bf16.mxu0 0
    %223 = vmatmul.mubr.bf16.gmra.mrb[0].mxu0 %v118
    %v224 = vpop.f32.mrb[0].mxu0
    %v225 = vadd.f32 %v140, %v224
    %v226 = vpop.f32.mrb[0].mxu0
    %v227 = vpop.f32.mrb[0].mxu0
    %v228 = vadd.f32 %v140, %v227
    %v229 = vpop.f32.mrb[0].mxu0
    %230 = vdwg.mxu0
    %v231 = vmul.f32 %v225, 0.5
    %v232 = vmul.f32 %v228, 0.5
    %v233 = vtanh.pop %v231
    %v234 = vtanh.pop %v232
    %v235 = vadd.f32 %v233, 1.0
    %v236 = vadd.f32 %v234, 1.0
    %v237 = vmul.f32 %v235, 0.5
    %v238 = vmul.f32 %v236, 0.5
    %239 = vst [vmem:[%s5] sm:$0xff] %v237
    %240 = vst [vmem:[%s5 + $0x8] sm:$0xff] %v238
    // Predicated region
    $region26: #{net_forward.1} parent=1 // pred_check
      _
    $region27: #{net_forward.1} parent=1 // pred_check_branch
      %242 = sbr.rel (0) target = $region29
    $region28: #{net_forward.1} parent=1 // pred_region
      _
    $region29: #{net_forward.1} parent=1 // pred_fallthru
      _
    // Predicated region
    $region30: #{net_forward.1} parent=1 // pred_check
      _
    $region31: #{net_forward.1} parent=1 // pred_check_branch
      %244 = sbr.rel (0) target = $region33
    $region32: #{net_forward.1} parent=1 // pred_region
      _
    $region33: #{net_forward.1} parent=1 // pred_fallthru
      _
    %245 = vsyncpa [#allocation3], 1

</llo_original>
